<compile_context>
chip_gen: v7x
topology: tpu7x:2x2x1
jax: 0.10.0
libtpu: 0.0.40
codegen_flags: <defaults>
</compile_context>

<pallas_src>
import functools

import numpy as np
import jax
import jax.numpy as jnp
from jax import lax
from jax.experimental import pallas as pl
from jax.experimental.pallas import tpu as pltpu

IMG_W = 1440.0
IMG_H = 2560.0

LANES = 128
R_TILE = 64                       # sublane rows per block (multiple of 8)
TILE_PAIRS = R_TILE * LANES       # 8192 pairs per grid step
NUM_CORES = 2                     # leading 'parallel' axis (megacore split on v7x)


def _overlap_kernel(n_ref, boxes_ref, iou_ref, cnt_ref):
    # n_ref:     SMEM (1,) int32  -- true number of pairs (scalar prefetch)
    # boxes_ref: VMEM (8, R_TILE, 128) f32 block
    #            rows 0..3 = bb1 (xc, yc, w, h), rows 4..7 = bb2 (xc, yc, w, h)
    # iou_ref / cnt_ref: VMEM (1, R_TILE, 128) f32, resident accumulators
    i = pl.program_id(0)
    j = pl.program_id(1)
    nj = pl.num_programs(1)

    @pl.when(j == 0)
    def _init():
        iou_ref[...] = jnp.zeros_like(iou_ref)
        cnt_ref[...] = jnp.zeros_like(cnt_ref)

    # xcycwh -> corners; image scaling folded into one multiply per component
    # (half-extents carry the 0.5 factor).
    xc1 = boxes_ref[0] * IMG_W
    yc1 = boxes_ref[1] * IMG_H
    hw1 = boxes_ref[2] * (0.5 * IMG_W)
    hh1 = boxes_ref[3] * (0.5 * IMG_H)
    xc2 = boxes_ref[4] * IMG_W
    yc2 = boxes_ref[5] * IMG_H
    hw2 = boxes_ref[6] * (0.5 * IMG_W)
    hh2 = boxes_ref[7] * (0.5 * IMG_H)

    x_left = jnp.maximum(xc1 - hw1, xc2 - hw2)
    x_right = jnp.minimum(xc1 + hw1, xc2 + hw2)
    y_top = jnp.maximum(yc1 - hh1, yc2 - hh2)
    y_bottom = jnp.minimum(yc1 + hh1, yc2 + hh2)

    # validity mask from the true pair count (no mask slab in HBM)
    row_ids = lax.broadcasted_iota(jnp.int32, (R_TILE, LANES), 0)
    lane_ids = lax.broadcasted_iota(jnp.int32, (R_TILE, LANES), 1)
    blk = i * nj + j
    gidx = (blk * R_TILE + row_ids) * LANES + lane_ids
    valid = gidx < n_ref[0]

    legal = (x_right >= x_left) & (y_bottom >= y_top) & valid

    inter = (x_right - x_left) * (y_bottom - y_top)
    area1 = 4.0 * (hw1 * hh1)     # == (w1*IMG_W) * (h1*IMG_H)
    area2 = 4.0 * (hw2 * hh2)
    min_area = jnp.minimum(area1, area2)

    # Guard the denominator only for padding/illegal lanes. Legal degenerate
    # pairs (zero-area boxes) still produce inf/nan exactly like the torch
    # reference and are caught by the final host-side range check.
    den = jnp.where(legal, min_area, 1.0)
    ratio = jnp.where(legal, inter / den, 0.0)

    iou_ref[0] += ratio
    cnt_ref[0] += legal.astype(jnp.float32)


@functools.lru_cache(maxsize=None)
def _build_overlap_call(num_j):
    def box_map(i, j, n):      # n = scalar-prefetch ref (unused here)
        return (0, i * num_j + j, 0)

    def out_map(i, j, n):
        return (i, 0, 0)

    return pl.pallas_call(
        _overlap_kernel,
        out_shape=(jax.ShapeDtypeStruct((NUM_CORES, R_TILE, LANES), jnp.float32),
                   jax.ShapeDtypeStruct((NUM_CORES, R_TILE, LANES), jnp.float32)),
        grid_spec=pltpu.PrefetchScalarGridSpec(
            num_scalar_prefetch=1,
            grid=(NUM_CORES, num_j),
            in_specs=[pl.BlockSpec((8, R_TILE, LANES), box_map)],
            out_specs=(pl.BlockSpec((1, R_TILE, LANES), out_map),
                       pl.BlockSpec((1, R_TILE, LANES), out_map)),
        ),
        compiler_params=pltpu.CompilerParams(
            dimension_semantics=("parallel", "arbitrary")),
    )


def _iou_pallas(boxes_packed, n_pairs):
    # boxes_packed: (8, R_total, 128) f32, R_total = NUM_CORES * num_j * R_TILE
    num_j = boxes_packed.shape[1] // (NUM_CORES * R_TILE)
    call = _build_overlap_call(num_j)
    n_arr = jnp.asarray([n_pairs], dtype=jnp.int32)
    iou_part, cnt_part = call(n_arr, boxes_packed)
    # tiny final cross-lane reduce done outside the kernel
    return jnp.stack([jnp.sum(iou_part), jnp.sum(cnt_part)])


def overlap_loss_intra(pred_boxes, id_, parent_id, type_id, reduction="sum"):
    # ---------------- host-side glue (data-dependent shapes) ----------------
    # TODO(synk): torch.unique / last-occurrence gathers / the pair-enumeration
    # while-loop produce data-dependent shapes; done in numpy, not in Pallas.
    pred_np = np.asarray(pred_boxes, dtype=np.float32).reshape(-1, 4)
    boxes = pred_np[1::2]                       # (B*S/2, 4), xcycwh in [0,1]
    id_np = np.asarray(id_, dtype=np.float64)
    parent_np = np.asarray(parent_id, dtype=np.float64)
    B, S = id_np.shape

    order = np.arange(B, dtype=np.float64) * (S / 2.0)
    offs = np.repeat(order, S).reshape(B, S)
    idg = (id_np + offs).reshape(-1)[1::2].astype(np.int64)
    pidg = (parent_np + offs).reshape(-1)[1::2].astype(np.int64)

    unique_types = np.unique(idg)
    last_idx = np.array([np.where(idg == u)[0][-1] for u in unique_types],
                        dtype=np.int64)
    unique_types_parent = pidg[last_idx]
    unique_parent = np.unique(unique_types_parent)

    x1_list, x2_list = [], []
    for p in unique_parent:
        grp = unique_types[np.where(unique_types_parent == p)[0]]
        n = grp.shape[0]
        k = n - 1
        k_p = k
        while k > 0:
            x1_list.append(grp[n - 1 - k])
            x2_list.append(grp[n - k_p])
            k_p -= 1
            if k_p == 0:
                k -= 1
                k_p = k

    P = len(x1_list)
    if P == 0:
        return jnp.float32(0.0)

    # last occurrence of each id value -> box row (same as torch's gather)
    id_to_last = {}
    for pos, v in enumerate(idg):
        id_to_last[int(v)] = pos
    idx1 = np.array([id_to_last[int(v)] for v in x1_list], dtype=np.int64)
    idx2 = np.array([id_to_last[int(v)] for v in x2_list], dtype=np.int64)

    bb1 = boxes[idx1]                           # (P, 4) xcycwh
    bb2 = boxes[idx2]                           # (P, 4) xcycwh

    # bucketed (power-of-two) padding -> small, cached set of compiled kernels
    per_step = NUM_CORES * TILE_PAIRS
    num_blocks = -(-P // per_step)              # ceil div
    num_j = 1 << (num_blocks - 1).bit_length() if num_blocks > 1 else 1
    P_pad = NUM_CORES * num_j * TILE_PAIRS
    R_total = P_pad // LANES

    flat = np.zeros((8, P_pad), dtype=np.float32)
    flat[0:4, :P] = bb1.T
    flat[4:8, :P] = bb2.T
    boxes_packed = flat.reshape(8, R_total, LANES)

    # ---------------- Pallas hot path ----------------
    totals = np.asarray(jax.block_until_ready(
        _iou_pallas(jnp.asarray(boxes_packed), P)))
    iou = float(totals[0])
    legal_num = float(totals[1])

    # same legality check as get_iou() (NaN/inf -> 0, empty -> 0)
    if legal_num == 0 or not (iou / legal_num >= 0.0) or not (iou / legal_num <= 1.0):
        return jnp.float32(0.0)
    if reduction == "sum":
        return jnp.float32(iou)
    return jnp.float32(iou / P)


if __name__ == "__main__":
    key = jax.random.PRNGKey(0)
    k1, k2, k3, k4 = jax.random.split(key, 4)

    B, S = 2, 8   # batch=2, sentence_size=8 -> 8 odd-indexed boxes
    pred_boxes = jax.random.uniform(k1, (B, S, 4), jnp.float32,
                                    minval=0.2, maxval=0.6)
    id_ = jax.random.randint(k2, (B, S), 0, S // 2).astype(jnp.float32)
    parent_id = jax.random.randint(k3, (B, S), 0, 2).astype(jnp.float32)
    type_id = jax.random.randint(k4, (B, S), 0, 3).astype(jnp.float32)

    out = overlap_loss_intra(pred_boxes, id_, parent_id, type_id,
                             reduction="sum")
    out = jax.block_until_ready(jnp.asarray(out))
    print("KERNEL_OK")
</pallas_src>

<mosaic_0001>
module attributes {stable_mosaic.version = 11 : i64} {
  func.func @_overlap_kernel(%arg0: i32, %arg1: i32, %arg2: memref<1xi32, #tpu.memory_space<smem>>, %arg3: memref<8x64x128xf32, #tpu.memory_space<vmem>>, %arg4: memref<1x64x128xf32, #tpu.memory_space<vmem>>, %arg5: memref<1x64x128xf32, #tpu.memory_space<vmem>>) attributes {dimension_semantics = [#tpu.dimension_semantics<parallel>, #tpu.dimension_semantics<arbitrary>], iteration_bounds = array<i64: 2, 1>, scalar_prefetch = 1 : i64, scratch_operands = 0 : i64, tpu.core_type = #tpu.core_type<tc>, window_params = [{transform_indices = @transform_0, window_bounds = array<i64: 8, 64, 128>}, {transform_indices = @transform_1, window_bounds = array<i64: 1, 64, 128>}, {transform_indices = @transform_2, window_bounds = array<i64: 1, 64, 128>}]} {
    %c0_i32 = arith.constant 0 : i32
    %0 = arith.cmpi eq, %arg1, %c0_i32 : i32
    %1 = arith.extui %0 : i1 to i32
    %c0_i32_0 = arith.constant 0 : i32
    %2 = arith.cmpi ne, %1, %c0_i32_0 : i32
    scf.if %2 {
      %cst_41 = arith.constant 0.000000e+00 : f32
      %93 = vector.broadcast %cst_41 : f32 to vector<1x64x128xf32>
      %c0_42 = arith.constant 0 : index
      %c0_43 = arith.constant 0 : index
      %c0_44 = arith.constant 0 : index
      %94 = vector.load %arg4[%c0_42, %c0_43, %c0_44] : memref<1x64x128xf32, #tpu.memory_space<vmem>>, vector<1x64x128xf32>
      tpu.vector_store %arg4[%c0_42, %c0_43, %c0_44], %93 {strides = array<i32>} : memref<1x64x128xf32, #tpu.memory_space<vmem>>, vector<1x64x128xf32>,
      %cst_45 = arith.constant 0.000000e+00 : f32
      %95 = vector.broadcast %cst_45 : f32 to vector<1x64x128xf32>
      %c0_46 = arith.constant 0 : index
      %c0_47 = arith.constant 0 : index
      %c0_48 = arith.constant 0 : index
      %96 = vector.load %arg5[%c0_46, %c0_47, %c0_48] : memref<1x64x128xf32, #tpu.memory_space<vmem>>, vector<1x64x128xf32>
      tpu.vector_store %arg5[%c0_46, %c0_47, %c0_48], %95 {strides = array<i32>} : memref<1x64x128xf32, #tpu.memory_space<vmem>>, vector<1x64x128xf32>,
    } else {
    }
    %c0 = arith.constant 0 : index
    %c0_1 = arith.constant 0 : index
    %c0_2 = arith.constant 0 : index
    %3 = vector.load %arg3[%c0, %c0_1, %c0_2] : memref<8x64x128xf32, #tpu.memory_space<vmem>>, vector<1x64x128xf32>
    %4 = vector.shape_cast %3 : vector<1x64x128xf32> to vector<64x128xf32>
    %cst = arith.constant 1.440000e+03 : f32
    %5 = vector.broadcast %cst : f32 to vector<64x128xf32>
    %6 = arith.mulf %4, %5 : vector<64x128xf32>
    %c1 = arith.constant 1 : index
    %c0_3 = arith.constant 0 : index
    %c0_4 = arith.constant 0 : index
    %7 = vector.load %arg3[%c1, %c0_3, %c0_4] : memref<8x64x128xf32, #tpu.memory_space<vmem>>, vector<1x64x128xf32>
    %8 = vector.shape_cast %7 : vector<1x64x128xf32> to vector<64x128xf32>
    %cst_5 = arith.constant 2.560000e+03 : f32
    %9 = vector.broadcast %cst_5 : f32 to vector<64x128xf32>
    %10 = arith.mulf %8, %9 : vector<64x128xf32>
    %c2 = arith.constant 2 : index
    %c0_6 = arith.constant 0 : index
    %c0_7 = arith.constant 0 : index
    %11 = vector.load %arg3[%c2, %c0_6, %c0_7] : memref<8x64x128xf32, #tpu.memory_space<vmem>>, vector<1x64x128xf32>
    %12 = vector.shape_cast %11 : vector<1x64x128xf32> to vector<64x128xf32>
    %cst_8 = arith.constant 7.200000e+02 : f32
    %13 = vector.broadcast %cst_8 : f32 to vector<64x128xf32>
    %14 = arith.mulf %12, %13 : vector<64x128xf32>
    %c3 = arith.constant 3 : index
    %c0_9 = arith.constant 0 : index
    %c0_10 = arith.constant 0 : index
    %15 = vector.load %arg3[%c3, %c0_9, %c0_10] : memref<8x64x128xf32, #tpu.memory_space<vmem>>, vector<1x64x128xf32>
    %16 = vector.shape_cast %15 : vector<1x64x128xf32> to vector<64x128xf32>
    %cst_11 = arith.constant 1.280000e+03 : f32
    %17 = vector.broadcast %cst_11 : f32 to vector<64x128xf32>
    %18 = arith.mulf %16, %17 : vector<64x128xf32>
    %c4 = arith.constant 4 : index
    %c0_12 = arith.constant 0 : index
    %c0_13 = arith.constant 0 : index
    %19 = vector.load %arg3[%c4, %c0_12, %c0_13] : memref<8x64x128xf32, #tpu.memory_space<vmem>>, vector<1x64x128xf32>
    %20 = vector.shape_cast %19 : vector<1x64x128xf32> to vector<64x128xf32>
    %cst_14 = arith.constant 1.440000e+03 : f32
    %21 = vector.broadcast %cst_14 : f32 to vector<64x128xf32>
    %22 = arith.mulf %20, %21 : vector<64x128xf32>
    %c5 = arith.constant 5 : index
    %c0_15 = arith.constant 0 : index
    %c0_16 = arith.constant 0 : index
    %23 = vector.load %arg3[%c5, %c0_15, %c0_16] : memref<8x64x128xf32, #tpu.memory_space<vmem>>, vector<1x64x128xf32>
    %24 = vector.shape_cast %23 : vector<1x64x128xf32> to vector<64x128xf32>
    %cst_17 = arith.constant 2.560000e+03 : f32
    %25 = vector.broadcast %cst_17 : f32 to vector<64x128xf32>
    %26 = arith.mulf %24, %25 : vector<64x128xf32>
    %c6 = arith.constant 6 : index
    %c0_18 = arith.constant 0 : index
    %c0_19 = arith.constant 0 : index
    %27 = vector.load %arg3[%c6, %c0_18, %c0_19] : memref<8x64x128xf32, #tpu.memory_space<vmem>>, vector<1x64x128xf32>
    %28 = vector.shape_cast %27 : vector<1x64x128xf32> to vector<64x128xf32>
    %cst_20 = arith.constant 7.200000e+02 : f32
    %29 = vector.broadcast %cst_20 : f32 to vector<64x128xf32>
    %30 = arith.mulf %28, %29 : vector<64x128xf32>
    %c7 = arith.constant 7 : index
    %c0_21 = arith.constant 0 : index
    %c0_22 = arith.constant 0 : index
    %31 = vector.load %arg3[%c7, %c0_21, %c0_22] : memref<8x64x128xf32, #tpu.memory_space<vmem>>, vector<1x64x128xf32>
    %32 = vector.shape_cast %31 : vector<1x64x128xf32> to vector<64x128xf32>
    %cst_23 = arith.constant 1.280000e+03 : f32
    %33 = vector.broadcast %cst_23 : f32 to vector<64x128xf32>
    %34 = arith.mulf %32, %33 : vector<64x128xf32>
    %35 = arith.subf %6, %14 : vector<64x128xf32>
    %36 = arith.subf %22, %30 : vector<64x128xf32>
    %37 = arith.maximumf %35, %36 : vector<64x128xf32>
    %38 = arith.addf %6, %14 : vector<64x128xf32>
    %39 = arith.addf %22, %30 : vector<64x128xf32>
    %40 = arith.minimumf %38, %39 : vector<64x128xf32>
    %41 = arith.subf %10, %18 : vector<64x128xf32>
    %42 = arith.subf %26, %34 : vector<64x128xf32>
    %43 = arith.maximumf %41, %42 : vector<64x128xf32>
    %44 = arith.addf %10, %18 : vector<64x128xf32>
    %45 = arith.addf %26, %34 : vector<64x128xf32>
    %46 = arith.minimumf %44, %45 : vector<64x128xf32>
    %47 = tpu.iota {dimensions = array<i32: 0>} : vector<64x128xi32>
    %48 = tpu.iota {dimensions = array<i32: 1>} : vector<64x128xi32>
    %c1_i32 = arith.constant 1 : i32
    %49 = arith.muli %arg0, %c1_i32 : i32
    %50 = arith.addi %49, %arg1 : i32
    %c64_i32 = arith.constant 64 : i32
    %51 = arith.muli %50, %c64_i32 : i32
    %52 = vector.broadcast %51 : i32 to vector<64x128xi32>
    %53 = arith.addi %52, %47 : vector<64x128xi32>
    %c128_i32 = arith.constant 128 : i32
    %54 = vector.broadcast %c128_i32 : i32 to vector<64x128xi32>
    %55 = arith.muli %53, %54 : vector<64x128xi32>
    %56 = arith.addi %55, %48 : vector<64x128xi32>
    %c0_24 = arith.constant 0 : index
    %57 = memref.load %arg2[%c0_24] : memref<1xi32, #tpu.memory_space<smem>>
    %58 = vector.broadcast %57 : i32 to vector<64x128xi32>
    %59 = arith.cmpi slt, %56, %58 : vector<64x128xi32>
    %60 = arith.cmpf oge, %40, %37 : vector<64x128xf32>
    %61 = arith.cmpf oge, %46, %43 : vector<64x128xf32>
    %62 = arith.andi %60, %61 : vector<64x128xi1>
    %63 = arith.andi %62, %59 : vector<64x128xi1>
    %64 = arith.subf %40, %37 : vector<64x128xf32>
    %65 = arith.subf %46, %43 : vector<64x128xf32>
    %66 = arith.mulf %64, %65 : vector<64x128xf32>
    %67 = arith.mulf %14, %18 : vector<64x128xf32>
    %cst_25 = arith.constant 4.000000e+00 : f32
    %68 = vector.broadcast %cst_25 : f32 to vector<64x128xf32>
    %69 = arith.mulf %68, %67 : vector<64x128xf32>
    %70 = arith.mulf %30, %34 : vector<64x128xf32>
    %cst_26 = arith.constant 4.000000e+00 : f32
    %71 = vector.broadcast %cst_26 : f32 to vector<64x128xf32>
    %72 = arith.mulf %71, %70 : vector<64x128xf32>
    %73 = arith.minimumf %69, %72 : vector<64x128xf32>
    %cst_27 = arith.constant 1.000000e+00 : f32
    %74 = vector.broadcast %cst_27 : f32 to vector<64x128xf32>
    %75 = arith.select %63, %73, %74 : vector<64x128xi1>, vector<64x128xf32>
    %76 = arith.divf %66, %75 : vector<64x128xf32>
    %cst_28 = arith.constant 0.000000e+00 : f32
    %77 = vector.broadcast %cst_28 : f32 to vector<64x128xf32>
    %78 = arith.select %63, %76, %77 : vector<64x128xi1>, vector<64x128xf32>
    %c0_29 = arith.constant 0 : index
    %c0_30 = arith.constant 0 : index
    %c0_31 = arith.constant 0 : index
    %79 = vector.load %arg4[%c0_29, %c0_30, %c0_31] : memref<1x64x128xf32, #tpu.memory_space<vmem>>, vector<1x64x128xf32>
    %80 = vector.shape_cast %79 : vector<1x64x128xf32> to vector<64x128xf32>
    %81 = arith.addf %80, %78 : vector<64x128xf32>
    %c0_32 = arith.constant 0 : index
    %c0_33 = arith.constant 0 : index
    %c0_34 = arith.constant 0 : index
    %82 = vector.load %arg4[%c0_32, %c0_33, %c0_34] : memref<1x64x128xf32, #tpu.memory_space<vmem>>, vector<1x64x128xf32>
    %83 = vector.shape_cast %82 : vector<1x64x128xf32> to vector<64x128xf32>
    %84 = vector.shape_cast %81 : vector<64x128xf32> to vector<1x64x128xf32>
    tpu.vector_store %arg4[%c0_32, %c0_33, %c0_34], %84 {strides = array<i32>} : memref<1x64x128xf32, #tpu.memory_space<vmem>>, vector<1x64x128xf32>,
    %c0_35 = arith.constant 0 : index
    %c0_36 = arith.constant 0 : index
    %c0_37 = arith.constant 0 : index
    %85 = vector.load %arg5[%c0_35, %c0_36, %c0_37] : memref<1x64x128xf32, #tpu.memory_space<vmem>>, vector<1x64x128xf32>
    %86 = vector.shape_cast %85 : vector<1x64x128xf32> to vector<64x128xf32>
    %87 = arith.extui %63 : vector<64x128xi1> to vector<64x128xi32>
    %88 = arith.sitofp %87 : vector<64x128xi32> to vector<64x128xf32>
    %89 = arith.addf %86, %88 : vector<64x128xf32>
    %c0_38 = arith.constant 0 : index
    %c0_39 = arith.constant 0 : index
    %c0_40 = arith.constant 0 : index
    %90 = vector.load %arg5[%c0_38, %c0_39, %c0_40] : memref<1x64x128xf32, #tpu.memory_space<vmem>>, vector<1x64x128xf32>
    %91 = vector.shape_cast %90 : vector<1x64x128xf32> to vector<64x128xf32>
    %92 = vector.shape_cast %89 : vector<64x128xf32> to vector<1x64x128xf32>
    tpu.vector_store %arg5[%c0_38, %c0_39, %c0_40], %92 {strides = array<i32>} : memref<1x64x128xf32, #tpu.memory_space<vmem>>, vector<1x64x128xf32>,
    return
  }
  func.func @transform_0(%arg0: i32, %arg1: i32, %arg2: memref<1xi32, #tpu.memory_space<smem>>) -> (i32, i32, i32) {
    %c1_i32 = arith.constant 1 : i32
    %0 = arith.muli %arg0, %c1_i32 : i32
    %1 = arith.addi %0, %arg1 : i32
    %c0_i32 = arith.constant 0 : i32
    %c0_i32_0 = arith.constant 0 : i32
    %c0_i32_1 = arith.constant 0 : i32
    return %c0_i32, %1, %c0_i32_0 : i32, i32, i32
  }
  func.func @transform_1(%arg0: i32, %arg1: i32, %arg2: memref<1xi32, #tpu.memory_space<smem>>) -> (i32, i32, i32) {
    %c0_i32 = arith.constant 0 : i32
    %c0_i32_0 = arith.constant 0 : i32
    %c0_i32_1 = arith.constant 0 : i32
    return %arg0, %c0_i32, %c0_i32_0 : i32, i32, i32
  }
  func.func @transform_2(%arg0: i32, %arg1: i32, %arg2: memref<1xi32, #tpu.memory_space<smem>>) -> (i32, i32, i32) {
    %c0_i32 = arith.constant 0 : i32
    %c0_i32_0 = arith.constant 0 : i32
    %c0_i32_1 = arith.constant 0 : i32
    return %arg0, %c0_i32, %c0_i32_0 : i32, i32, i32
  }
}

</mosaic_0001>

<llo_original>
// kernel: tpu_custom_call.1
$region0: #{tpu_custom_call.1}
  #allocation0 [shape = 'u32[]', space=smem, size = 0x4, offset = 0x4, fixed_abs, tag = 'smem constant byte address 0x4 - core index']
  #allocation1 [shape = 'u32[144,128]{1,0:T(1,128)}', space=vmem, size = 0x12000, scoped, tag = 'internal scratch']
  #allocation2 [shape = 's32[1]{0}', space=sflag, size = 0x4, scoped, tag = 'scoped memory for tpu_custom_call.1']
  #allocation3 [shape = 's32[1]{0:T(128)S(6)}', space=smem, size = 0x200, scoped, tag = 'prefetched SMEM operand 0']
  #allocation10 [shape = 's32[]', space=sflag, size = 0x4, offset = 0, fixed_abs, tag = 'sflag constant byte address 0x0 - dummy sync flag']
  %s0 = inlined_call_operand.<no memory space> [shape: s32[1], index: 0, kind: input, shape index: {}]
  %s1 = inlined_call_operand.hbm [shape: f32[8,128,128], index: 1, kind: input, shape index: {}]
  %s2 = inlined_call_operand.hbm [shape: f32[2,64,128], index: 2, kind: output, shape index: {0}]
  %s3 = inlined_call_operand.hbm [shape: f32[2,64,128], index: 3, kind: output, shape index: {1}]
  %4 = xla_tuple %s2, %s3
  %s5 = sld [smem:[#allocation0]]
  $region53: #{tpu_custom_call.1} parent=0
    _
  %s7 = ssub.s32 1, %s5
  %s8 = scalar_select 0, %s7, %s5
  %9 = sst [smem:[#allocation3]] %s0
  $region1: #{tpu_custom_call.1} parent=0
    #allocation4 [shape = 'u8[524288]{0}', space=vmem, size = 0x80000, scoped, tag = 'input window, operand 1']
    #allocation5 [shape = 's32[2]{0}', space=sflag, size = 0x8, scoped, tag = 'scoped memory for tpu_custom_call.1']
    #allocation6 [shape = 's32[2]{0}', space=sflag, size = 0x8, scoped, tag = 'scoped memory for tpu_custom_call.1']
    #allocation7 [shape = 'u8[65536]{0}', space=vmem, size = 0x10000, scoped, tag = 'output window, operand 0']
    #allocation8 [shape = 'u8[65536]{0}', space=vmem, size = 0x10000, scoped, tag = 'output window, operand 1']
    #allocation9 [shape = 's32[2]{0}', space=sflag, size = 0x8, scoped, tag = 'scoped memory for tpu_custom_call.1']
    %10 = vsyncpa [#allocation5], 0
    %s11 = scalar_lea.sflag [#allocation5], 1
    %12 = vsyncpa %s11, 0
    %13 = vsyncpa [#allocation6], 0
    %s14 = scalar_lea.sflag [#allocation6], 1
    %15 = vsyncpa %s14, 0
    %16 = vsyncpa [#allocation9], 0
    %s17 = scalar_lea.sflag [#allocation9], 1
    %18 = vsyncpa %s17, 0
    loop: start=0, step=1, limit=4
    $region2: #{tpu_custom_call.1} parent=1 // loop_pre_header
      _
    $region3: #{tpu_custom_call.1} parent=1 // loop_header
      %s20 = sphi 0, %s24
      %p21 = scmp.ge.s32.totalorder %s20, 4
      %s27 = sphi 0, %s39
      %s28 = sphi 0, %s35
      %s29 = sphi 0, %s27
      %s30 = sphi 0, %s28
      %s31 = sphi 0, %s29
      %s32 = sphi 0, %s30
      %s44 = sphi 0, %s46
      %s47 = sphi 0, %s44
      %s48 = sphi 0, %s47
      %s64 = sphi 0, %s48
      %s70 = sphi 0, %s72
      %s73 = sphi 0, %s70
      %s74 = sphi 0, %s73
      %s90 = sphi 0, %s74
      %s96 = sphi 0, %s98
      %s99 = sphi 0, %s96
      %s100 = sphi 0, %s99
      %s116 = sphi 0, %s100
    $region4: #{tpu_custom_call.1} parent=1 // loop_header_branch
      %23 = sbr.rel (%p21) target = $region8
    $region5: #{tpu_custom_call.1} parent=1 // loop_body
      %s25 = ssub.s32 %s20, 1
      %s26 = ssub.s32 %s20, 2
      %s33 = sadd.s32 1, %s28
      %p34 = scmp.ge.s32.totalorder %s33, 1
      %s35 = scalar_select %p34, 0, %s33
      %s36 = sadd.s32 1, %s27
      %s37 = scalar_select %p34, %s36, %s27
      %p38 = scmp.ge.s32.totalorder %s37, 2
      %s39 = scalar_select %p38, 0, %s37
      %s40 = sadd.s32 %s27, %s28
      %s41 = sadd.s32 %s39, %s35
      %s42 = ssub.s32 %s40, %s41
      %p43 = scmp.eq.s32.totalorder %s42, 0
      %s45 = sadd.s32 %s44, 1
      %s46 = scalar_select %p43, %s44, %s45
      %p49 = pneg %p43
      %p50 = scmp.eq.s32.totalorder %s20, 1
      %p51 = por %p49, %p50
      %p52 = scmp.ne.s32.totalorder %s44, %s47
      %p53 = scmp.eq.s32.totalorder %s20, 0
      %p54 = por %p52, %p53
      %p55 = scmp.ne.s32.totalorder %s44, %s47
      %p56 = scmp.eq.s32.totalorder %s25, 1
      %p57 = por %p55, %p56
      %p58 = scmp.ne.s32.totalorder %s47, %s48
      %p59 = scmp.eq.s32.totalorder %s25, 0
      %p60 = por %p58, %p59
      %p61 = scmp.ne.s32.totalorder %s47, %s48
      %p62 = scmp.eq.s32.totalorder %s26, 1
      %p63 = por %p61, %p62
      %p65 = scmp.ne.s32.totalorder %s48, %s64
      %p66 = scmp.eq.s32.totalorder %s26, 0
      %p67 = por %p65, %p66
      %s68 = ssub.s32 %s27, %s39
      %p69 = scmp.eq.s32.totalorder %s68, 0
      %s71 = sadd.s32 %s70, 1
      %s72 = scalar_select %p69, %s70, %s71
      %p75 = pneg %p69
      %p76 = scmp.eq.s32.totalorder %s20, 1
      %p77 = por %p75, %p76
      %p78 = scmp.ne.s32.totalorder %s70, %s73
      %p79 = scmp.eq.s32.totalorder %s20, 0
      %p80 = por %p78, %p79
      %p81 = scmp.ne.s32.totalorder %s70, %s73
      %p82 = scmp.eq.s32.totalorder %s25, 1
      %p83 = por %p81, %p82
      %p84 = scmp.ne.s32.totalorder %s73, %s74
      %p85 = scmp.eq.s32.totalorder %s25, 0
      %p86 = por %p84, %p85
      %p87 = scmp.ne.s32.totalorder %s73, %s74
      %p88 = scmp.eq.s32.totalorder %s26, 1
      %p89 = por %p87, %p88
      %p91 = scmp.ne.s32.totalorder %s74, %s90
      %p92 = scmp.eq.s32.totalorder %s26, 0
      %p93 = por %p91, %p92
      %s94 = ssub.s32 %s27, %s39
      %p95 = scmp.eq.s32.totalorder %s94, 0
      %s97 = sadd.s32 %s96, 1
      %s98 = scalar_select %p95, %s96, %s97
      %p101 = pneg %p95
      %p102 = scmp.eq.s32.totalorder %s20, 1
      %p103 = por %p101, %p102
      %p104 = scmp.ne.s32.totalorder %s96, %s99
      %p105 = scmp.eq.s32.totalorder %s20, 0
      %p106 = por %p104, %p105
      %p107 = scmp.ne.s32.totalorder %s96, %s99
      %p108 = scmp.eq.s32.totalorder %s25, 1
      %p109 = por %p107, %p108
      %p110 = scmp.ne.s32.totalorder %s99, %s100
      %p111 = scmp.eq.s32.totalorder %s25, 0
      %p112 = por %p110, %p111
      %p113 = scmp.ne.s32.totalorder %s99, %s100
      %p114 = scmp.eq.s32.totalorder %s26, 1
      %p115 = por %p113, %p114
      %p117 = scmp.ne.s32.totalorder %s100, %s116
      %p118 = scmp.eq.s32.totalorder %s26, 0
      %p119 = por %p117, %p118
      %p120 = scmp.le.s32.totalorder 1, %s20
      %p121 = scmp.lt.s32.totalorder %s20, 3
      %p122 = pnand %p120, %p121
      %p123 = pneg %p122
      // Predicated region
      $region9: #{tpu_custom_call.1} parent=5 // pred_check
        _
      $region10: #{tpu_custom_call.1} parent=5 // pred_check_branch
        %125 = sbr.rel (%p122) target = $region12
      $region11: #{tpu_custom_call.1} parent=5 // pred_region
        %s126 = ssub.s32 %s20, 1
      $region12: #{tpu_custom_call.1} parent=5 // pred_fallthru
        _
      %p127 = scmp.lt.s32.totalorder %s20, 2
      // Predicated region
      $region13: #{tpu_custom_call.1} parent=5 // pred_check
        %p128 = pneg %p127
      $region14: #{tpu_custom_call.1} parent=5 // pred_check_branch
        %130 = sbr.rel (%p128) target = $region16
      $region15: #{tpu_custom_call.1} parent=5 // pred_region
        // Predicated region
        $region17: #{tpu_custom_call.1} parent=15 // pred_check
          %p131 = pneg %p54
        $region18: #{tpu_custom_call.1} parent=15 // pred_check_branch
          %133 = sbr.rel (%p131) target = $region20
        $region19: #{tpu_custom_call.1} parent=15 // pred_region
          #allocation11 [shape = 'u32[6]{0}', space=smem, size = 0x18, scoped, tag = 'DMA stride descriptor']
          %s134 = sand.u32 %s44, 1
          %s135 = scalar_lea.sflag [#allocation5], %s134
          %s136 = sand.u32 %s44, 1
          %s137 = smul.addr %s136, 512
          %s138 = scalar_lea.vmem [#allocation4], %s137
          %s139 = sadd.s32 %s27, %s28
          %s140 = smul.u32 8, %s139
          %s142 = ssub.s32 8192, 8192
          %143 = vsyncadd %s135, %s142
          %s144 = smul.addr %s140, 128
          %s145 = scalar_lea.hbm %s1, %s144
          %s147 = sshll.u32 1, 14
          %s148 = sxor.u32 4294967295, %s147
          %s150 = sld [smem:[#allocation0]]
          %s151 = sadd.s32 2, %s150
          %s153 = sshll.u32 7, 26
          %s154 = sxor.u32 4294967295, %s153
          %s155 = sand.u32 0, %s154
          %s156 = sshll.u32 %s151, 26
          %s157 = sor.u32 %s155, %s156
          %s158 = sshll.u32 %s138, 4
          %s159 = int_to_ptr.vmem [resolvable:$true] %s158
          %165 = sst [smem:[#allocation11]] 2048
          %s166 = scalar_lea.smem [#allocation11], 1
          %167 = sst [smem:[%s166]] 1024
          %s168 = scalar_lea.smem [#allocation11], 2
          %169 = sst [smem:[%s168]] 8
          %s170 = scalar_lea.smem [#allocation11], 3
          %171 = sst [smem:[%s170]] 128
          %s172 = scalar_lea.smem [#allocation11], 4
          %173 = sst [smem:[%s172]] 128
          %s174 = scalar_lea.smem [#allocation11], 5
          %175 = sst [smem:[%s174]] 8
          %177 = dma.general %s145, 8192, %s159, %s135, [#allocation10], [#allocation11], %s157, 0
        $region20: #{tpu_custom_call.1} parent=15 // pred_fallthru
          _
      $region16: #{tpu_custom_call.1} parent=5 // pred_fallthru
        _
      %p178 = scmp.le.s32.totalorder 1, %s20
      %p179 = scmp.lt.s32.totalorder %s20, 3
      %p180 = pnand %p178, %p179
      %p181 = pneg %p180
      // Predicated region
      $region21: #{tpu_custom_call.1} parent=5 // pred_check
        _
      $region22: #{tpu_custom_call.1} parent=5 // pred_check_branch
        %183 = sbr.rel (%p180) target = $region24
      $region23: #{tpu_custom_call.1} parent=5 // pred_region
        %s184 = ssub.s32 %s20, 1
        %s185 = sand.u32 %s47, 1
        %s186 = scalar_lea.sflag [#allocation5], %s185
        %s187 = sand.u32 %s47, 1
        %s188 = smul.addr %s187, 512
        %s189 = scalar_lea.vmem [#allocation4], %s188
        // Predicated region
        $region25: #{tpu_custom_call.1} parent=23 // pred_check
          %p190 = pneg %p60
        $region26: #{tpu_custom_call.1} parent=23 // pred_check_branch
          %192 = sbr.rel (%p190) target = $region28
        $region27: #{tpu_custom_call.1} parent=23 // pred_region
          %193 = dma.done %s186, 8192
        $region28: #{tpu_custom_call.1} parent=23 // pred_fallthru
          _
        %s194 = sand.u32 %s47, 1
        %s195 = scalar_lea.sflag [#allocation5], %s194
        %s196 = sand.u32 %s47, 1
        %s197 = smul.addr %s196, 512
        %s198 = scalar_lea.vmem [#allocation4], %s197
        %p199 = pneg %p60
        %p200 = pneg %p57
        %p201 = pneg %p86
        %p202 = pneg %p83
        %s203 = sand.u32 %s73, 1
        %s204 = scalar_lea.sflag [#allocation6], %s203
        %s205 = sand.u32 %s73, 1
        %s206 = smul.addr %s205, 64
        %s207 = scalar_lea.vmem [#allocation7], %s206
        %p208 = pneg %p112
        %p209 = pneg %p109
        %s210 = sand.u32 %s99, 1
        %s211 = scalar_lea.sflag [#allocation9], %s210
        %s212 = sand.u32 %s99, 1
        %s213 = smul.addr %s212, 64
        %s214 = scalar_lea.vmem [#allocation8], %s213
        %s215 = sadd.s32 %s29, %s30
        %s216 = smul.u32 8, %s215
        %p217 = scmp.eq.s32.totalorder %s30, 0
        // Predicated region
        $region29: #{tpu_custom_call.1} parent=23 // pred_check
          %p218 = pneg %p217
        $region30: #{tpu_custom_call.1} parent=23 // pred_check_branch
          %220 = sbr.rel (%p218) target = $region32
        $region31: #{tpu_custom_call.1} parent=23 // pred_region
          %221 = vst [vmem:[%s207] sm:$0xff] 0.0
          %222 = vst [vmem:[%s207 + $0x8] sm:$0xff] 0.0
          %223 = vst [vmem:[%s207 + $0x10] sm:$0xff] 0.0
          %224 = vst [vmem:[%s207 + $0x18] sm:$0xff] 0.0
          %225 = vst [vmem:[%s207 + $0x20] sm:$0xff] 0.0
          %226 = vst [vmem:[%s207 + $0x28] sm:$0xff] 0.0
          %227 = vst [vmem:[%s207 + $0x30] sm:$0xff] 0.0
          %228 = vst [vmem:[%s207 + $0x38] sm:$0xff] 0.0
          %229 = vst [vmem:[%s214] sm:$0xff] 0.0
          %230 = vst [vmem:[%s214 + $0x8] sm:$0xff] 0.0
          %231 = vst [vmem:[%s214 + $0x10] sm:$0xff] 0.0
          %232 = vst [vmem:[%s214 + $0x18] sm:$0xff] 0.0
          %233 = vst [vmem:[%s214 + $0x20] sm:$0xff] 0.0
          %234 = vst [vmem:[%s214 + $0x28] sm:$0xff] 0.0
          %235 = vst [vmem:[%s214 + $0x30] sm:$0xff] 0.0
          %236 = vst [vmem:[%s214 + $0x38] sm:$0xff] 0.0
        $region32: #{tpu_custom_call.1} parent=23 // pred_fallthru
          _
        %v237 = vld [vmem:[%s189] sm:$0xff]
        %v238 = vld [vmem:[%s189 + $0x8] sm:$0xff]
        %v239 = vld [vmem:[%s189 + $0x10] sm:$0xff]
        %v240 = vld [vmem:[%s189 + $0x18] sm:$0xff]
        %v241 = vld [vmem:[%s189 + $0x20] sm:$0xff]
        %v242 = vld [vmem:[%s189 + $0x28] sm:$0xff]
        %v243 = vld [vmem:[%s189 + $0x30] sm:$0xff]
        %v244 = vld [vmem:[%s189 + $0x38] sm:$0xff]
        %v245 = vmul.f32 %v237, 1440.0
        %v246 = vmul.f32 %v238, 1440.0
        %v247 = vmul.f32 %v239, 1440.0
        %v248 = vmul.f32 %v240, 1440.0
        %v249 = vmul.f32 %v241, 1440.0
        %v250 = vmul.f32 %v242, 1440.0
        %v251 = vmul.f32 %v243, 1440.0
        %v252 = vmul.f32 %v244, 1440.0
        %s253 = scalar_lea.vmem %s189, 64 [#allocation4]
        %v254 = vld [vmem:[%s253] sm:$0xff]
        %v255 = vld [vmem:[%s253 + $0x8] sm:$0xff]
        %v256 = vld [vmem:[%s253 + $0x10] sm:$0xff]
        %v257 = vld [vmem:[%s253 + $0x18] sm:$0xff]
        %v258 = vld [vmem:[%s253 + $0x20] sm:$0xff]
        %v259 = vld [vmem:[%s253 + $0x28] sm:$0xff]
        %v260 = vld [vmem:[%s253 + $0x30] sm:$0xff]
        %v261 = vld [vmem:[%s253 + $0x38] sm:$0xff]
        %v262 = vmul.f32 %v254, 2560.0
        %v263 = vmul.f32 %v255, 2560.0
        %v264 = vmul.f32 %v256, 2560.0
        %v265 = vmul.f32 %v257, 2560.0
        %v266 = vmul.f32 %v258, 2560.0
        %v267 = vmul.f32 %v259, 2560.0
        %v268 = vmul.f32 %v260, 2560.0
        %v269 = vmul.f32 %v261, 2560.0
        %s270 = scalar_lea.vmem %s189, 128 [#allocation4]
        %v271 = vld [vmem:[%s270] sm:$0xff]
        %v272 = vld [vmem:[%s270 + $0x8] sm:$0xff]
        %v273 = vld [vmem:[%s270 + $0x10] sm:$0xff]
        %v274 = vld [vmem:[%s270 + $0x18] sm:$0xff]
        %v275 = vld [vmem:[%s270 + $0x20] sm:$0xff]
        %v276 = vld [vmem:[%s270 + $0x28] sm:$0xff]
        %v277 = vld [vmem:[%s270 + $0x30] sm:$0xff]
        %v278 = vld [vmem:[%s270 + $0x38] sm:$0xff]
        %v279 = vmul.f32 %v271, 720.0
        %v280 = vmul.f32 %v272, 720.0
        %v281 = vmul.f32 %v273, 720.0
        %v282 = vmul.f32 %v274, 720.0
        %v283 = vmul.f32 %v275, 720.0
        %v284 = vmul.f32 %v276, 720.0
        %v285 = vmul.f32 %v277, 720.0
        %v286 = vmul.f32 %v278, 720.0
        %s287 = scalar_lea.vmem %s189, 192 [#allocation4]
        %v288 = vld [vmem:[%s287] sm:$0xff]
        %v289 = vld [vmem:[%s287 + $0x8] sm:$0xff]
        %v290 = vld [vmem:[%s287 + $0x10] sm:$0xff]
        %v291 = vld [vmem:[%s287 + $0x18] sm:$0xff]
        %v292 = vld [vmem:[%s287 + $0x20] sm:$0xff]
        %v293 = vld [vmem:[%s287 + $0x28] sm:$0xff]
        %v294 = vld [vmem:[%s287 + $0x30] sm:$0xff]
        %v295 = vld [vmem:[%s287 + $0x38] sm:$0xff]
        %v296 = vmul.f32 %v288, 1280.0
        %v297 = vmul.f32 %v289, 1280.0
        %v298 = vmul.f32 %v290, 1280.0
        %v299 = vmul.f32 %v291, 1280.0
        %v300 = vmul.f32 %v292, 1280.0
        %v301 = vmul.f32 %v293, 1280.0
        %v302 = vmul.f32 %v294, 1280.0
        %v303 = vmul.f32 %v295, 1280.0
        %s304 = scalar_lea.vmem %s189, 256 [#allocation4]
        %v305 = vld [vmem:[%s304] sm:$0xff]
        %v306 = vld [vmem:[%s304 + $0x8] sm:$0xff]
        %v307 = vld [vmem:[%s304 + $0x10] sm:$0xff]
        %v308 = vld [vmem:[%s304 + $0x18] sm:$0xff]
        %v309 = vld [vmem:[%s304 + $0x20] sm:$0xff]
        %v310 = vld [vmem:[%s304 + $0x28] sm:$0xff]
        %v311 = vld [vmem:[%s304 + $0x30] sm:$0xff]
        %v312 = vld [vmem:[%s304 + $0x38] sm:$0xff]
        %v313 = vmul.f32 %v305, 1440.0
        %v314 = vmul.f32 %v306, 1440.0
        %v315 = vmul.f32 %v307, 1440.0
        %v316 = vmul.f32 %v308, 1440.0
        %v317 = vmul.f32 %v309, 1440.0
        %v318 = vmul.f32 %v310, 1440.0
        %v319 = vmul.f32 %v311, 1440.0
        %v320 = vmul.f32 %v312, 1440.0
        %s321 = scalar_lea.vmem %s189, 320 [#allocation4]
        %v322 = vld [vmem:[%s321] sm:$0xff]
        %v323 = vld [vmem:[%s321 + $0x8] sm:$0xff]
        %v324 = vld [vmem:[%s321 + $0x10] sm:$0xff]
        %v325 = vld [vmem:[%s321 + $0x18] sm:$0xff]
        %v326 = vld [vmem:[%s321 + $0x20] sm:$0xff]
        %v327 = vld [vmem:[%s321 + $0x28] sm:$0xff]
        %v328 = vld [vmem:[%s321 + $0x30] sm:$0xff]
        %v329 = vld [vmem:[%s321 + $0x38] sm:$0xff]
        %v330 = vmul.f32 %v322, 2560.0
        %v331 = vmul.f32 %v323, 2560.0
        %v332 = vmul.f32 %v324, 2560.0
        %v333 = vmul.f32 %v325, 2560.0
        %v334 = vmul.f32 %v326, 2560.0
        %v335 = vmul.f32 %v327, 2560.0
        %v336 = vmul.f32 %v328, 2560.0
        %v337 = vmul.f32 %v329, 2560.0
        %s338 = scalar_lea.vmem %s189, 384 [#allocation4]
        %v339 = vld [vmem:[%s338] sm:$0xff]
        %v340 = vld [vmem:[%s338 + $0x8] sm:$0xff]
        %v341 = vld [vmem:[%s338 + $0x10] sm:$0xff]
        %v342 = vld [vmem:[%s338 + $0x18] sm:$0xff]
        %v343 = vld [vmem:[%s338 + $0x20] sm:$0xff]
        %v344 = vld [vmem:[%s338 + $0x28] sm:$0xff]
        %v345 = vld [vmem:[%s338 + $0x30] sm:$0xff]
        %v346 = vld [vmem:[%s338 + $0x38] sm:$0xff]
        %v347 = vmul.f32 %v339, 720.0
        %v348 = vmul.f32 %v340, 720.0
        %v349 = vmul.f32 %v341, 720.0
        %v350 = vmul.f32 %v342, 720.0
        %v351 = vmul.f32 %v343, 720.0
        %v352 = vmul.f32 %v344, 720.0
        %v353 = vmul.f32 %v345, 720.0
        %v354 = vmul.f32 %v346, 720.0
        %s355 = scalar_lea.vmem %s189, 448 [#allocation4]
        %v356 = vld [vmem:[%s355] sm:$0xff]
        %v357 = vld [vmem:[%s355 + $0x8] sm:$0xff]
        %v358 = vld [vmem:[%s355 + $0x10] sm:$0xff]
        %v359 = vld [vmem:[%s355 + $0x18] sm:$0xff]
        %v360 = vld [vmem:[%s355 + $0x20] sm:$0xff]
        %v361 = vld [vmem:[%s355 + $0x28] sm:$0xff]
        %v362 = vld [vmem:[%s355 + $0x30] sm:$0xff]
        %v363 = vld [vmem:[%s355 + $0x38] sm:$0xff]
        %v364 = vmul.f32 %v356, 1280.0
        %v365 = vmul.f32 %v357, 1280.0
        %v366 = vmul.f32 %v358, 1280.0
        %v367 = vmul.f32 %v359, 1280.0
        %v368 = vmul.f32 %v360, 1280.0
        %v369 = vmul.f32 %v361, 1280.0
        %v370 = vmul.f32 %v362, 1280.0
        %v371 = vmul.f32 %v363, 1280.0
        %v372 = vsub.f32 %v245, %v279
        %v373 = vsub.f32 %v246, %v280
        %v374 = vsub.f32 %v247, %v281
        %v375 = vsub.f32 %v248, %v282
        %v376 = vsub.f32 %v249, %v283
        %v377 = vsub.f32 %v250, %v284
        %v378 = vsub.f32 %v251, %v285
        %v379 = vsub.f32 %v252, %v286
        %v380 = vsub.f32 %v313, %v347
        %v381 = vsub.f32 %v314, %v348
        %v382 = vsub.f32 %v315, %v349
        %v383 = vsub.f32 %v316, %v350
        %v384 = vsub.f32 %v317, %v351
        %v385 = vsub.f32 %v318, %v352
        %v386 = vsub.f32 %v319, %v353
        %v387 = vsub.f32 %v320, %v354
        %v388 = vmax.f32 %v372, %v380
        %v389 = vmax.f32 %v373, %v381
        %v390 = vmax.f32 %v374, %v382
        %v391 = vmax.f32 %v375, %v383
        %v392 = vmax.f32 %v376, %v384
        %v393 = vmax.f32 %v377, %v385
        %v394 = vmax.f32 %v378, %v386
        %v395 = vmax.f32 %v379, %v387
        %v396 = vadd.f32 %v245, %v279
        %v397 = vadd.f32 %v246, %v280
        %v398 = vadd.f32 %v247, %v281
        %v399 = vadd.f32 %v248, %v282
        %v400 = vadd.f32 %v249, %v283
        %v401 = vadd.f32 %v250, %v284
        %v402 = vadd.f32 %v251, %v285
        %v403 = vadd.f32 %v252, %v286
        %v404 = vadd.f32 %v313, %v347
        %v405 = vadd.f32 %v314, %v348
        %v406 = vadd.f32 %v315, %v349
        %v407 = vadd.f32 %v316, %v350
        %v408 = vadd.f32 %v317, %v351
        %v409 = vadd.f32 %v318, %v352
        %v410 = vadd.f32 %v319, %v353
        %v411 = vadd.f32 %v320, %v354
        %v412 = vmin.f32 %v396, %v404
        %v413 = vmin.f32 %v397, %v405
        %v414 = vmin.f32 %v398, %v406
        %v415 = vmin.f32 %v399, %v407
        %v416 = vmin.f32 %v400, %v408
        %v417 = vmin.f32 %v401, %v409
        %v418 = vmin.f32 %v402, %v410
        %v419 = vmin.f32 %v403, %v411
        %v420 = vsub.f32 %v262, %v296
        %v421 = vsub.f32 %v263, %v297
        %v422 = vsub.f32 %v264, %v298
        %v423 = vsub.f32 %v265, %v299
        %v424 = vsub.f32 %v266, %v300
        %v425 = vsub.f32 %v267, %v301
        %v426 = vsub.f32 %v268, %v302
        %v427 = vsub.f32 %v269, %v303
        %v428 = vsub.f32 %v330, %v364
        %v429 = vsub.f32 %v331, %v365
        %v430 = vsub.f32 %v332, %v366
        %v431 = vsub.f32 %v333, %v367
        %v432 = vsub.f32 %v334, %v368
        %v433 = vsub.f32 %v335, %v369
        %v434 = vsub.f32 %v336, %v370
        %v435 = vsub.f32 %v337, %v371
        %v436 = vmax.f32 %v420, %v428
        %v437 = vmax.f32 %v421, %v429
        %v438 = vmax.f32 %v422, %v430
        %v439 = vmax.f32 %v423, %v431
        %v440 = vmax.f32 %v424, %v432
        %v441 = vmax.f32 %v425, %v433
        %v442 = vmax.f32 %v426, %v434
        %v443 = vmax.f32 %v427, %v435
        %v444 = vadd.f32 %v262, %v296
        %v445 = vadd.f32 %v263, %v297
        %v446 = vadd.f32 %v264, %v298
        %v447 = vadd.f32 %v265, %v299
        %v448 = vadd.f32 %v266, %v300
        %v449 = vadd.f32 %v267, %v301
        %v450 = vadd.f32 %v268, %v302
        %v451 = vadd.f32 %v269, %v303
        %v452 = vadd.f32 %v330, %v364
        %v453 = vadd.f32 %v331, %v365
        %v454 = vadd.f32 %v332, %v366
        %v455 = vadd.f32 %v333, %v367
        %v456 = vadd.f32 %v334, %v368
        %v457 = vadd.f32 %v335, %v369
        %v458 = vadd.f32 %v336, %v370
        %v459 = vadd.f32 %v337, %v371
        %v460 = vmin.f32 %v444, %v452
        %v461 = vmin.f32 %v445, %v453
        %v462 = vmin.f32 %v446, %v454
        %v463 = vmin.f32 %v447, %v455
        %v464 = vmin.f32 %v448, %v456
        %v465 = vmin.f32 %v449, %v457
        %v466 = vmin.f32 %v450, %v458
        %v467 = vmin.f32 %v451, %v459
        %v468 = vlaneseq
        %v469 = vshrl.u32 %v468, 7
        %v470 = vadd.s32 %v469, 8
        %v471 = vadd.s32 %v469, 16
        %v472 = vadd.s32 %v469, 24
        %v473 = vadd.s32 %v469, 32
        %v474 = vadd.s32 %v469, 40
        %v475 = vadd.s32 %v469, 48
        %v476 = vadd.s32 %v469, 56
        %v477 = vlaneseq
        %v478 = vand.u32 %v477, 127
        %s479 = sadd.s32 %s29, %s30
        %s480 = smul.u32 %s479, 64
        %v481 = vstv %s480
        %v482 = vadd.s32 %v481, %v469
        %v483 = vadd.s32 %v481, %v470
        %v484 = vadd.s32 %v481, %v471
        %v485 = vadd.s32 %v481, %v472
        %v486 = vadd.s32 %v481, %v473
        %v487 = vadd.s32 %v481, %v474
        %v488 = vadd.s32 %v481, %v475
        %v489 = vadd.s32 %v481, %v476
        %v490 = vmul.u32 %v482, 128
        %v491 = vmul.u32 %v483, 128
        %v492 = vmul.u32 %v484, 128
        %v493 = vmul.u32 %v485, 128
        %v494 = vmul.u32 %v486, 128
        %v495 = vmul.u32 %v487, 128
        %v496 = vmul.u32 %v488, 128
        %v497 = vmul.u32 %v489, 128
        %v498 = vadd.s32 %v490, %v478
        %v499 = vadd.s32 %v491, %v478
        %v500 = vadd.s32 %v492, %v478
        %v501 = vadd.s32 %v493, %v478
        %v502 = vadd.s32 %v494, %v478
        %v503 = vadd.s32 %v495, %v478
        %v504 = vadd.s32 %v496, %v478
        %v505 = vadd.s32 %v497, %v478
        %s506 = sld [smem:[#allocation3]]
        %v507 = vstv %s506
        %vm508 = vcmp.lt.s32.totalorder %v498, %v507
        %vm509 = vcmp.lt.s32.totalorder %v499, %v507
        %vm510 = vcmp.lt.s32.totalorder %v500, %v507
        %vm511 = vcmp.lt.s32.totalorder %v501, %v507
        %vm512 = vcmp.lt.s32.totalorder %v502, %v507
        %vm513 = vcmp.lt.s32.totalorder %v503, %v507
        %vm514 = vcmp.lt.s32.totalorder %v504, %v507
        %vm515 = vcmp.lt.s32.totalorder %v505, %v507
        %vm516 = vcmp.ge.f32.partialorder %v412, %v388
        %vm517 = vcmp.ge.f32.partialorder %v413, %v389
        %vm518 = vcmp.ge.f32.partialorder %v414, %v390
        %vm519 = vcmp.ge.f32.partialorder %v415, %v391
        %vm520 = vcmp.ge.f32.partialorder %v416, %v392
        %vm521 = vcmp.ge.f32.partialorder %v417, %v393
        %vm522 = vcmp.ge.f32.partialorder %v418, %v394
        %vm523 = vcmp.ge.f32.partialorder %v419, %v395
        %vm524 = vcmp.ge.f32.partialorder %v460, %v436
        %vm525 = vcmp.ge.f32.partialorder %v461, %v437
        %vm526 = vcmp.ge.f32.partialorder %v462, %v438
        %vm527 = vcmp.ge.f32.partialorder %v463, %v439
        %vm528 = vcmp.ge.f32.partialorder %v464, %v440
        %vm529 = vcmp.ge.f32.partialorder %v465, %v441
        %vm530 = vcmp.ge.f32.partialorder %v466, %v442
        %vm531 = vcmp.ge.f32.partialorder %v467, %v443
        %vm532 = vmand %vm516, %vm524
        %vm533 = vmand %vm517, %vm525
        %vm534 = vmand %vm518, %vm526
        %vm535 = vmand %vm519, %vm527
        %vm536 = vmand %vm520, %vm528
        %vm537 = vmand %vm521, %vm529
        %vm538 = vmand %vm522, %vm530
        %vm539 = vmand %vm523, %vm531
        %vm540 = vmand %vm532, %vm508
        %vm541 = vmand %vm533, %vm509
        %vm542 = vmand %vm534, %vm510
        %vm543 = vmand %vm535, %vm511
        %vm544 = vmand %vm536, %vm512
        %vm545 = vmand %vm537, %vm513
        %vm546 = vmand %vm538, %vm514
        %vm547 = vmand %vm539, %vm515
        %v548 = vsub.f32 %v412, %v388
        %v549 = vsub.f32 %v413, %v389
        %v550 = vsub.f32 %v414, %v390
        %v551 = vsub.f32 %v415, %v391
        %v552 = vsub.f32 %v416, %v392
        %v553 = vsub.f32 %v417, %v393
        %v554 = vsub.f32 %v418, %v394
        %v555 = vsub.f32 %v419, %v395
        %v556 = vsub.f32 %v460, %v436
        %v557 = vsub.f32 %v461, %v437
        %v558 = vsub.f32 %v462, %v438
        %v559 = vsub.f32 %v463, %v439
        %v560 = vsub.f32 %v464, %v440
        %v561 = vsub.f32 %v465, %v441
        %v562 = vsub.f32 %v466, %v442
        %v563 = vsub.f32 %v467, %v443
        %v564 = vmul.f32 %v548, %v556
        %v565 = vmul.f32 %v549, %v557
        %v566 = vmul.f32 %v550, %v558
        %v567 = vmul.f32 %v551, %v559
        %v568 = vmul.f32 %v552, %v560
        %v569 = vmul.f32 %v553, %v561
        %v570 = vmul.f32 %v554, %v562
        %v571 = vmul.f32 %v555, %v563
        %v572 = vmul.f32 %v279, %v296
        %v573 = vmul.f32 %v280, %v297
        %v574 = vmul.f32 %v281, %v298
        %v575 = vmul.f32 %v282, %v299
        %v576 = vmul.f32 %v283, %v300
        %v577 = vmul.f32 %v284, %v301
        %v578 = vmul.f32 %v285, %v302
        %v579 = vmul.f32 %v286, %v303
        %v580 = vmul.f32 %v572, 4.0
        %v581 = vmul.f32 %v573, 4.0
        %v582 = vmul.f32 %v574, 4.0
        %v583 = vmul.f32 %v575, 4.0
        %v584 = vmul.f32 %v576, 4.0
        %v585 = vmul.f32 %v577, 4.0
        %v586 = vmul.f32 %v578, 4.0
        %v587 = vmul.f32 %v579, 4.0
        %v588 = vmul.f32 %v347, %v364
        %v589 = vmul.f32 %v348, %v365
        %v590 = vmul.f32 %v349, %v366
        %v591 = vmul.f32 %v350, %v367
        %v592 = vmul.f32 %v351, %v368
        %v593 = vmul.f32 %v352, %v369
        %v594 = vmul.f32 %v353, %v370
        %v595 = vmul.f32 %v354, %v371
        %v596 = vmul.f32 %v588, 4.0
        %v597 = vmul.f32 %v589, 4.0
        %v598 = vmul.f32 %v590, 4.0
        %v599 = vmul.f32 %v591, 4.0
        %v600 = vmul.f32 %v592, 4.0
        %v601 = vmul.f32 %v593, 4.0
        %v602 = vmul.f32 %v594, 4.0
        %v603 = vmul.f32 %v595, 4.0
        %v604 = vmin.f32 %v580, %v596
        %v605 = vmin.f32 %v581, %v597
        %v606 = vmin.f32 %v582, %v598
        %v607 = vmin.f32 %v583, %v599
        %v608 = vmin.f32 %v584, %v600
        %v609 = vmin.f32 %v585, %v601
        %v610 = vmin.f32 %v586, %v602
        %v611 = vmin.f32 %v587, %v603
        %v612 = vsel %vm540, %v604, 1.0
        %v613 = vsel %vm541, %v605, 1.0
        %v614 = vsel %vm542, %v606, 1.0
        %v615 = vsel %vm543, %v607, 1.0
        %v616 = vsel %vm544, %v608, 1.0
        %v617 = vsel %vm545, %v609, 1.0
        %v618 = vsel %vm546, %v610, 1.0
        %v619 = vsel %vm547, %v611, 1.0
        %v620 = vrcp.pop %v612
        %v621 = vmul.f32 %v564, %v620
        %v622 = vrcp.pop %v613
        %v623 = vmul.f32 %v565, %v622
        %v624 = vrcp.pop %v614
        %v625 = vmul.f32 %v566, %v624
        %v626 = vrcp.pop %v615
        %v627 = vmul.f32 %v567, %v626
        %v628 = vrcp.pop %v616
        %v629 = vmul.f32 %v568, %v628
        %v630 = vrcp.pop %v617
        %v631 = vmul.f32 %v569, %v630
        %v632 = vrcp.pop %v618
        %v633 = vmul.f32 %v570, %v632
        %v634 = vrcp.pop %v619
        %v635 = vmul.f32 %v571, %v634
        %v636 = vsel %vm540, %v621, 0.0
        %v637 = vsel %vm541, %v623, 0.0
        %v638 = vsel %vm542, %v625, 0.0
        %v639 = vsel %vm543, %v627, 0.0
        %v640 = vsel %vm544, %v629, 0.0
        %v641 = vsel %vm545, %v631, 0.0
        %v642 = vsel %vm546, %v633, 0.0
        %v643 = vsel %vm547, %v635, 0.0
        %v644 = vld [vmem:[%s207] sm:$0xff]
        %v645 = vld [vmem:[%s207 + $0x8] sm:$0xff]
        %v646 = vld [vmem:[%s207 + $0x10] sm:$0xff]
        %v647 = vld [vmem:[%s207 + $0x18] sm:$0xff]
        %v648 = vld [vmem:[%s207 + $0x20] sm:$0xff]
        %v649 = vld [vmem:[%s207 + $0x28] sm:$0xff]
        %v650 = vld [vmem:[%s207 + $0x30] sm:$0xff]
        %v651 = vld [vmem:[%s207 + $0x38] sm:$0xff]
        %v652 = vadd.f32 %v644, %v636
        %v653 = vadd.f32 %v645, %v637
        %v654 = vadd.f32 %v646, %v638
        %v655 = vadd.f32 %v647, %v639
        %v656 = vadd.f32 %v648, %v640
        %v657 = vadd.f32 %v649, %v641
        %v658 = vadd.f32 %v650, %v642
        %v659 = vadd.f32 %v651, %v643
        %660 = vst [vmem:[%s207] sm:$0xff] %v652
        %661 = vst [vmem:[%s207 + $0x8] sm:$0xff] %v653
        %662 = vst [vmem:[%s207 + $0x10] sm:$0xff] %v654
        %663 = vst [vmem:[%s207 + $0x18] sm:$0xff] %v655
        %664 = vst [vmem:[%s207 + $0x20] sm:$0xff] %v656
        %665 = vst [vmem:[%s207 + $0x28] sm:$0xff] %v657
        %666 = vst [vmem:[%s207 + $0x30] sm:$0xff] %v658
        %667 = vst [vmem:[%s207 + $0x38] sm:$0xff] %v659
        %v668 = vld [vmem:[%s214] sm:$0xff]
        %v669 = vld [vmem:[%s214 + $0x8] sm:$0xff]
        %v670 = vld [vmem:[%s214 + $0x10] sm:$0xff]
        %v671 = vld [vmem:[%s214 + $0x18] sm:$0xff]
        %v672 = vld [vmem:[%s214 + $0x20] sm:$0xff]
        %v673 = vld [vmem:[%s214 + $0x28] sm:$0xff]
        %v674 = vld [vmem:[%s214 + $0x30] sm:$0xff]
        %v675 = vld [vmem:[%s214 + $0x38] sm:$0xff]
        %v676 = vsel %vm540, 1, 0
        %v677 = vsel %vm541, 1, 0
        %v678 = vsel %vm542, 1, 0
        %v679 = vsel %vm543, 1, 0
        %v680 = vsel %vm544, 1, 0
        %v681 = vsel %vm545, 1, 0
        %v682 = vsel %vm546, 1, 0
        %v683 = vsel %vm547, 1, 0
        %v684 = vcvt.s32.f32 %v676
        %v685 = vcvt.s32.f32 %v677
        %v686 = vcvt.s32.f32 %v678
        %v687 = vcvt.s32.f32 %v679
        %v688 = vcvt.s32.f32 %v680
        %v689 = vcvt.s32.f32 %v681
        %v690 = vcvt.s32.f32 %v682
        %v691 = vcvt.s32.f32 %v683
        %v692 = vadd.f32 %v668, %v684
        %v693 = vadd.f32 %v669, %v685
        %v694 = vadd.f32 %v670, %v686
        %v695 = vadd.f32 %v671, %v687
        %v696 = vadd.f32 %v672, %v688
        %v697 = vadd.f32 %v673, %v689
        %v698 = vadd.f32 %v674, %v690
        %v699 = vadd.f32 %v675, %v691
        %700 = vst [vmem:[%s214] sm:$0xff] %v692
        %701 = vst [vmem:[%s214 + $0x8] sm:$0xff] %v693
        %702 = vst [vmem:[%s214 + $0x10] sm:$0xff] %v694
        %703 = vst [vmem:[%s214 + $0x18] sm:$0xff] %v695
        %704 = vst [vmem:[%s214 + $0x20] sm:$0xff] %v696
        %705 = vst [vmem:[%s214 + $0x28] sm:$0xff] %v697
        %706 = vst [vmem:[%s214 + $0x30] sm:$0xff] %v698
        %707 = vst [vmem:[%s214 + $0x38] sm:$0xff] %v699
        %s708 = sand.u32 %s73, 1
        %s709 = scalar_lea.sflag [#allocation6], %s708
        %s710 = sand.u32 %s73, 1
        %s711 = smul.addr %s710, 64
        %s712 = scalar_lea.vmem [#allocation7], %s711
        %s713 = sand.u32 %s99, 1
        %s714 = scalar_lea.sflag [#allocation9], %s713
        %s715 = sand.u32 %s99, 1
        %s716 = smul.addr %s715, 64
        %s717 = scalar_lea.vmem [#allocation8], %s716
        // Predicated region
        $region33: #{tpu_custom_call.1} parent=23 // pred_check
          %p718 = pneg %p83
        $region34: #{tpu_custom_call.1} parent=23 // pred_check_branch
          %720 = sbr.rel (%p718) target = $region36
        $region35: #{tpu_custom_call.1} parent=23 // pred_region
          %s722 = ssub.s32 1024, 1024
          %723 = vsyncadd %s709, %s722
          %s724 = smul.addr %s29, 8
          %s725 = smul.addr %s724, 128
          %s726 = scalar_lea.hbm %s2, %s725
          %s727 = sshll.u32 %s712, 4
          %s728 = int_to_ptr.vmem [resolvable:$true] %s727
          %733 = dma.vmem_to_hbm [thread:$0]  %s728, 1024, %s726, %s709, 128, 128, 8
        $region36: #{tpu_custom_call.1} parent=23 // pred_fallthru
          _
        // Predicated region
        $region37: #{tpu_custom_call.1} parent=23 // pred_check
          %p734 = pneg %p109
        $region38: #{tpu_custom_call.1} parent=23 // pred_check_branch
          %736 = sbr.rel (%p734) target = $region40
        $region39: #{tpu_custom_call.1} parent=23 // pred_region
          %s738 = ssub.s32 1024, 1024
          %739 = vsyncadd %s714, %s738
          %s740 = smul.addr %s29, 8
          %s741 = smul.addr %s740, 128
          %s742 = scalar_lea.hbm %s3, %s741
          %s743 = sshll.u32 %s717, 4
          %s744 = int_to_ptr.vmem [resolvable:$true] %s743
          %749 = dma.vmem_to_hbm [thread:$0]  %s744, 1024, %s742, %s714, 128, 128, 8
        $region40: #{tpu_custom_call.1} parent=23 // pred_fallthru
          _
      $region24: #{tpu_custom_call.1} parent=5 // pred_fallthru
        _
      %p750 = scmp.le.s32.totalorder 2, %s20
      // Predicated region
      $region41: #{tpu_custom_call.1} parent=5 // pred_check
        %p751 = pneg %p750
      $region42: #{tpu_custom_call.1} parent=5 // pred_check_branch
        %753 = sbr.rel (%p751) target = $region44
      $region43: #{tpu_custom_call.1} parent=5 // pred_region
        %s754 = ssub.s32 %s20, 2
        // Predicated region
        $region45: #{tpu_custom_call.1} parent=43 // pred_check
          %p755 = pneg %p89
        $region46: #{tpu_custom_call.1} parent=43 // pred_check_branch
          %757 = sbr.rel (%p755) target = $region48
        $region47: #{tpu_custom_call.1} parent=43 // pred_region
          %s758 = sand.u32 %s74, 1
          %s759 = scalar_lea.sflag [#allocation6], %s758
          %s760 = sand.u32 %s74, 1
          %s761 = smul.addr %s760, 64
          %s762 = scalar_lea.vmem [#allocation7], %s761
          %763 = dma.done %s759, 1024
        $region48: #{tpu_custom_call.1} parent=43 // pred_fallthru
          _
        // Predicated region
        $region49: #{tpu_custom_call.1} parent=43 // pred_check
          %p764 = pneg %p115
        $region50: #{tpu_custom_call.1} parent=43 // pred_check_branch
          %766 = sbr.rel (%p764) target = $region52
        $region51: #{tpu_custom_call.1} parent=43 // pred_region
          %s767 = sand.u32 %s100, 1
          %s768 = scalar_lea.sflag [#allocation9], %s767
          %s769 = sand.u32 %s100, 1
          %s770 = smul.addr %s769, 64
          %s771 = scalar_lea.vmem [#allocation8], %s770
          %772 = dma.done %s768, 1024
        $region52: #{tpu_custom_call.1} parent=43 // pred_fallthru
          _
      $region44: #{tpu_custom_call.1} parent=5 // pred_fallthru
        _
    $region6: #{tpu_custom_call.1} parent=1 // loop_footer
      %s24 = sadd.s32 1, %s20
    $region7: #{tpu_custom_call.1} parent=1 // loop_footer_branch
      %19 = sbr.rel target = $region3
    $region8: #{tpu_custom_call.1} parent=1 // loop_exit
      _
    %773 = vsyncpa [#allocation5], 1
    %s774 = scalar_lea.sflag [#allocation5], 1
    %775 = vsyncpa %s774, 1
    %776 = vsyncpa [#allocation6], 1
    %s777 = scalar_lea.sflag [#allocation6], 1
    %778 = vsyncpa %s777, 1
    %779 = vsyncpa [#allocation9], 1
    %s780 = scalar_lea.sflag [#allocation9], 1
    %781 = vsyncpa %s780, 1

</llo_original>
